<compile_context>
chip_gen: v6e
topology: v6e:2x2x1
jax: 0.10.0
libtpu: 0.0.40
codegen_flags: <defaults>
</compile_context>

<pallas_src>
import jax
import jax.numpy as jnp
from jax.experimental import pallas as pl
from jax.experimental.pallas import tpu as pltpu


# ----------------------------- shapes -------------------------------------
IN_DIM = 32      # input feature dim fed to the encoder
ENC_HID = 64     # encoder hidden dim
ENC_OUT = 32     # encoder[-1].out_features
DEC_HID = 16     # hidden_dims = [DEC_HID]
OUT_DIM = 10     # output_dim (number of classes)

LANE = 128       # TPU lane width; folded weight padded to this internally
NEG_PAD = -1e30  # bias for padded class lanes -> softmax mass exactly 0

# Packed-weight slab layout (rows; all blocks start on a sublane multiple of 8)
R_WE1 = 0                    # rows [0, 32)   : we1 (IN_DIM, ENC_HID) in cols [0, 64)
R_BE1 = 32                   # row  32        : be1 (1, ENC_HID)      in cols [0, 64)
R_WF = 40                    # rows [40, 168) : Wf padded to (LANE, LANE)
R_BF = 168                   # row  168       : bf padded to (1, LANE), NEG_PAD elsewhere
SLAB_ROWS = 176              # multiple of 8

# ~0.35 us per grid step -> 512-row tiles sit near the HBM roofline while the
# per-tile VMEM footprint (x + logits + out, double-buffered) stays < 1 MiB.
DEFAULT_TILE_M = 512


# ----------------------------- kernel --------------------------------------
def encoding_classifier_kernel(x_ref, w_ref, out_ref):
    x = x_ref[...]                                  # (tile_m, IN_DIM)

    we1 = w_ref[R_WE1:R_WE1 + IN_DIM, :]            # (IN_DIM, LANE), zero-padded cols
    be1 = w_ref[R_BE1:R_BE1 + 1, :]                 # (1, LANE)
    wf = w_ref[R_WF:R_WF + LANE, :]                 # (LANE, LANE), zero-padded
    bf = w_ref[R_BF:R_BF + 1, :]                    # (1, LANE), NEG_PAD on fake classes

    # encoder Linear 1 + ReLU (padded lanes stay exactly 0)
    h = jnp.maximum(
        jnp.dot(x, we1, preferred_element_type=jnp.float32) + be1, 0.0)

    # folded linear tail: encoder Linear 2 -> decoder Linears (no activation)
    logits = jnp.dot(h, wf, preferred_element_type=jnp.float32) + bf

    # numerically stable softmax over the (lane-padded) class axis;
    # padded lanes carry -1e30 bias -> exp underflows to exactly 0
    m = jnp.max(logits, axis=-1, keepdims=True)
    e = jnp.exp(logits - m)
    denom = jnp.sum(e, axis=-1, keepdims=True)      # >= 1, well conditioned
    # EUP-slot approximate reciprocal + one Newton step -> ~2^-24 rel error
    r = pl.reciprocal(denom, approx=True)
    r = r * (2.0 - denom * r)
    probs = e * r

    # narrow store: only the OUT_DIM real classes hit HBM
    out_ref[...] = probs[:, :OUT_DIM]


# ----------------------------- wrapper --------------------------------------
def _round_up(v, m):
    return ((v + m - 1) // m) * m


def _pick_tile_m(b, tile_m):
    """Sublane-rounded tile that amortizes step overhead and keeps >=2 grid
    steps (v7x megacore) whenever there are >=16 padded rows."""
    b8 = _round_up(max(b, 8), 8)
    if tile_m is None:
        tile_m = DEFAULT_TILE_M
    tile_m = _round_up(max(int(tile_m), 8), 8)
    tile_m = min(tile_m, b8)
    if b8 >= 16:
        tile_m = min(tile_m, _round_up(pl.cdiv(b8, 2), 8))
    return tile_m


def encoding_classifier_forward(x, packed_w, *, tile_m=None):
    """x: (B, IN_DIM) f32, packed_w: (SLAB_ROWS, LANE) f32 -> (B, OUT_DIM)."""
    b = x.shape[0]
    tile_m = _pick_tile_m(b, tile_m)
    grid_m = pl.cdiv(b, tile_m)
    b_pad = grid_m * tile_m
    # Pad/slice only when the batch is ragged w.r.t. the tile (at most
    # tile_m-1 extra rows); the common aligned path has no extra HBM passes.
    # TODO(synk): fully ragged-in-kernel masking could drop even this pad.
    if b_pad != b:
        x = jnp.pad(x, ((0, b_pad - b), (0, 0)))

    out = pl.pallas_call(
        encoding_classifier_kernel,
        out_shape=jax.ShapeDtypeStruct((b_pad, OUT_DIM), jnp.float32),
        grid=(grid_m,),
        in_specs=[
            pl.BlockSpec((tile_m, IN_DIM), lambda i: (i, 0)),
            # constant index map -> weight slab DMA'd once, reused every tile
            pl.BlockSpec((SLAB_ROWS, LANE), lambda i: (0, 0)),
        ],
        out_specs=pl.BlockSpec((tile_m, OUT_DIM), lambda i: (i, 0)),
        compiler_params=pltpu.CompilerParams(
            dimension_semantics=("parallel",)),
    )(x, packed_w)
    return out if b_pad == b else out[:b]


# ------------------------ fold + pack parameters ----------------------------
def fold_linear_tail(params):
    """Fold we2/wd1/wd2 (+ biases) into a single (ENC_HID, OUT_DIM) linear."""
    _, _, we2, be2, wd1, bd1, wd2, bd2 = params
    hp = jax.lax.Precision.HIGHEST
    wf = jnp.dot(jnp.dot(we2, wd1, precision=hp), wd2, precision=hp)
    bf = (jnp.dot(jnp.dot(be2, wd1, precision=hp), wd2, precision=hp)
          + jnp.dot(bd1, wd2, precision=hp) + bd2)
    return wf, bf                                   # (ENC_HID, OUT_DIM), (1, OUT_DIM)


def pack_params(params):
    """Build the single lane-padded f32 weight slab consumed by the kernel."""
    we1, be1 = params[0], params[1]
    wf, bf = fold_linear_tail(params)
    slab = jnp.zeros((SLAB_ROWS, LANE), jnp.float32)
    slab = slab.at[R_WE1:R_WE1 + IN_DIM, 0:ENC_HID].set(we1)
    slab = slab.at[R_BE1, 0:ENC_HID].set(be1[0])
    slab = slab.at[R_WF:R_WF + ENC_HID, 0:OUT_DIM].set(wf)
    slab = slab.at[R_BF, :].set(jnp.full((LANE,), NEG_PAD, jnp.float32))
    slab = slab.at[R_BF, 0:OUT_DIM].set(bf[0])
    return slab


# --------------------------- parameter init ---------------------------------
def init_params(key):
    """Deterministic synthetic parameters (PyTorch-Linear-like uniform init)."""
    def linear(key, fan_in, fan_out):
        kw, kb = jax.random.split(key)
        bound = 1.0 / jnp.sqrt(fan_in)
        w = jax.random.uniform(kw, (fan_in, fan_out), jnp.float32, -bound, bound)
        b = jax.random.uniform(kb, (1, fan_out), jnp.float32, -bound, bound)
        return w, b

    keys = jax.random.split(key, 4)
    we1, be1 = linear(keys[0], IN_DIM, ENC_HID)
    we2, be2 = linear(keys[1], ENC_HID, ENC_OUT)
    wd1, bd1 = linear(keys[2], ENC_OUT, DEC_HID)
    wd2, bd2 = linear(keys[3], DEC_HID, OUT_DIM)
    return (we1, be1, we2, be2, wd1, bd1, wd2, bd2)


# ----------------------------- references -----------------------------------
def reference_folded(x, params):
    """Same folded structure as the kernel (validates the Pallas lowering)."""
    we1, be1 = params[0], params[1]
    wf, bf = fold_linear_tail(params)
    h = jnp.maximum(x @ we1 + be1, 0.0)
    logits = h @ wf + bf
    return jax.nn.softmax(logits, axis=-1)


def reference_chain(x, params):
    """Original (unfolded) module semantics, full-precision f32 matmuls."""
    we1, be1, we2, be2, wd1, bd1, wd2, bd2 = params
    hp = jax.lax.Precision.HIGHEST
    h = jnp.maximum(jnp.dot(x, we1, precision=hp) + be1, 0.0)
    enc = jnp.dot(h, we2, precision=hp) + be2
    d = jnp.dot(enc, wd1, precision=hp) + bd1
    logits = jnp.dot(d, wd2, precision=hp) + bd2
    return jax.nn.softmax(logits, axis=-1)


# ------------------------------- main ---------------------------------------
if __name__ == "__main__":
    key = jax.random.PRNGKey(0)
    kx, kp = jax.random.split(key)

    BATCH = 16
    x = jax.random.normal(kx, (BATCH, IN_DIM), dtype=jnp.float32)
    params = init_params(kp)
    packed_w = pack_params(params)          # fold + pack once; reused across calls

    # B=16 -> tile_m=8, 2-step parallel grid, no pad/slice, narrow OUT_DIM output
    out = jax.block_until_ready(encoding_classifier_forward(x, packed_w))
    assert out.shape == (BATCH, OUT_DIM)

    # tight check vs. a reference with the same folded structure
    ref_f = reference_folded(x, params)
    assert jnp.allclose(out, ref_f, atol=1e-5, rtol=1e-5), "mismatch vs folded reference"

    # module-semantics check (unfolded chain); loose tol covers the fp32
    # reassociation of the folded linear tail under TPU matmul precision
    ref_c = reference_chain(x, params)
    assert jnp.allclose(out, ref_c, atol=1e-3, rtol=1e-3), "mismatch vs module reference"

    # softmax rows sum to 1
    assert jnp.allclose(jnp.sum(out, axis=-1), 1.0, atol=1e-5)

    # ragged batch -> exercises the pad/slice path + multi-step grid
    x13 = jax.random.normal(jax.random.PRNGKey(1), (13, IN_DIM), dtype=jnp.float32)
    out13 = jax.block_until_ready(encoding_classifier_forward(x13, packed_w))
    assert out13.shape == (13, OUT_DIM)
    assert jnp.allclose(out13, reference_folded(x13, params), atol=1e-5, rtol=1e-5)

    # larger batch -> exercises the big-tile path (tile_m=512, 2 grid steps)
    x1k = jax.random.normal(jax.random.PRNGKey(2), (1024, IN_DIM), dtype=jnp.float32)
    out1k = jax.block_until_ready(encoding_classifier_forward(x1k, packed_w))
    assert out1k.shape == (1024, OUT_DIM)
    assert jnp.allclose(out1k, reference_folded(x1k, params), atol=1e-5, rtol=1e-5)
    assert jnp.allclose(jnp.sum(out1k, axis=-1), 1.0, atol=1e-5)

    print("KERNEL_OK")
</pallas_src>

<mosaic_0001>
module attributes {stable_mosaic.version = 11 : i64} {
  func.func @encoding_classifier_kernel(%arg0: i32, %arg1: memref<8x32xf32, #tpu.memory_space<vmem>>, %arg2: memref<176x128xf32, #tpu.memory_space<vmem>>, %arg3: memref<8x10xf32, #tpu.memory_space<vmem>>) attributes {dimension_semantics = [#tpu.dimension_semantics<parallel>], iteration_bounds = array<i64: 2>, scalar_prefetch = 0 : i64, scratch_operands = 0 : i64, tpu.core_type = #tpu.core_type<tc>, window_params = [{transform_indices = @transform_0, window_bounds = array<i64: 8, 32>}, {pipeline_mode = #tpu.pipeline_mode<synchronous>, transform_indices = @transform_1, window_bounds = array<i64: 176, 128>}, {transform_indices = @transform_2, window_bounds = array<i64: 8, 10>}]} {
    %c0 = arith.constant 0 : index
    %c0_0 = arith.constant 0 : index
    %0 = vector.load %arg1[%c0, %c0_0] : memref<8x32xf32, #tpu.memory_space<vmem>>, vector<8x32xf32>
    %c0_1 = arith.constant 0 : index
    %c0_2 = arith.constant 0 : index
    %1 = vector.load %arg2[%c0_1, %c0_2] : memref<176x128xf32, #tpu.memory_space<vmem>>, vector<32x128xf32>
    %c32 = arith.constant 32 : index
    %c0_3 = arith.constant 0 : index
    %2 = vector.load %arg2[%c32, %c0_3] : memref<176x128xf32, #tpu.memory_space<vmem>>, vector<1x128xf32>
    %c40 = arith.constant 40 : index
    %c0_4 = arith.constant 0 : index
    %3 = vector.load %arg2[%c40, %c0_4] : memref<176x128xf32, #tpu.memory_space<vmem>>, vector<128x128xf32>
    %c168 = arith.constant 168 : index
    %c0_5 = arith.constant 0 : index
    %4 = vector.load %arg2[%c168, %c0_5] : memref<176x128xf32, #tpu.memory_space<vmem>>, vector<1x128xf32>
    %cst = arith.constant dense<0.000000e+00> : vector<8x128xf32>
    %5 = tpu.matmul %0, %1, %cst {dimension_numbers = #tpu.dot_dimension_numbers<[1], [0], [0], [1], [0, 0, 1, 1], [], []>} : vector<8x32xf32>, vector<32x128xf32>, vector<8x128xf32> -> vector<8x128xf32>
    %6 = vector.broadcast %2 : vector<1x128xf32> to vector<8x128xf32>
    %7 = arith.addf %5, %6 : vector<8x128xf32>
    %cst_6 = arith.constant 0.000000e+00 : f32
    %8 = vector.broadcast %cst_6 : f32 to vector<8x128xf32>
    %9 = arith.maximumf %7, %8 : vector<8x128xf32>
    %cst_7 = arith.constant dense<0.000000e+00> : vector<8x128xf32>
    %10 = tpu.matmul %9, %3, %cst_7 {dimension_numbers = #tpu.dot_dimension_numbers<[1], [0], [0], [1], [0, 0, 1, 1], [], []>} : vector<8x128xf32>, vector<128x128xf32>, vector<8x128xf32> -> vector<8x128xf32>
    %11 = vector.broadcast %4 : vector<1x128xf32> to vector<8x128xf32>
    %12 = arith.addf %10, %11 : vector<8x128xf32>
    %cst_8 = arith.constant dense<0xFF800000> : vector<8xf32>
    %13 = vector.multi_reduction <maximumf>, %12, %cst_8 [1] : vector<8x128xf32> to vector<8xf32>
    %14 = vector.shape_cast %13 : vector<8xf32> to vector<8x1xf32>
    %15 = vector.broadcast %14 : vector<8x1xf32> to vector<8x128xf32>
    %16 = arith.subf %12, %15 : vector<8x128xf32>
    %17 = math.exp %16 : vector<8x128xf32>
    %cst_9 = arith.constant dense<0.000000e+00> : vector<8xf32>
    %18 = vector.multi_reduction <add>, %17, %cst_9 [1] : vector<8x128xf32> to vector<8xf32>
    %19 = vector.shape_cast %18 : vector<8xf32> to vector<8x1xf32>
    %20 = tpu.reciprocal %19 {approx = true} : vector<8x1xf32> -> vector<8x1xf32>
    %21 = arith.mulf %19, %20 : vector<8x1xf32>
    %cst_10 = arith.constant 2.000000e+00 : f32
    %22 = vector.broadcast %cst_10 : f32 to vector<8x1xf32>
    %23 = arith.subf %22, %21 : vector<8x1xf32>
    %24 = arith.mulf %20, %23 : vector<8x1xf32>
    %25 = vector.broadcast %24 : vector<8x1xf32> to vector<8x128xf32>
    %26 = arith.mulf %17, %25 : vector<8x128xf32>
    %27 = vector.extract_strided_slice %26 {offsets = [0, 0], sizes = [8, 10], strides = [1, 1]} : vector<8x128xf32> to vector<8x10xf32>
    %c0_11 = arith.constant 0 : index
    %c0_12 = arith.constant 0 : index
    %28 = vector.load %arg3[%c0_11, %c0_12] : memref<8x10xf32, #tpu.memory_space<vmem>>, vector<8x10xf32>
    tpu.vector_store %arg3[%c0_11, %c0_12], %27 {strides = array<i32>} : memref<8x10xf32, #tpu.memory_space<vmem>>, vector<8x10xf32>,
    return
  }
  func.func @transform_0(%arg0: i32) -> (i32, i32) {
    %c0_i32 = arith.constant 0 : i32
    %c0_i32_0 = arith.constant 0 : i32
    return %arg0, %c0_i32 : i32, i32
  }
  func.func @transform_1(%arg0: i32) -> (i32, i32) {
    %c0_i32 = arith.constant 0 : i32
    %c0_i32_0 = arith.constant 0 : i32
    %c0_i32_1 = arith.constant 0 : i32
    return %c0_i32, %c0_i32_0 : i32, i32
  }
  func.func @transform_2(%arg0: i32) -> (i32, i32) {
    %c0_i32 = arith.constant 0 : i32
    %c0_i32_0 = arith.constant 0 : i32
    return %arg0, %c0_i32 : i32, i32
  }
}

</mosaic_0001>

<llo_original>
// kernel: tpu_custom_call.1
$region0: #{tpu_custom_call.1}
  #allocation0 [shape = 'u32[]', space=smem, size = 0x4, offset = 0x4, fixed_abs, tag = 'smem constant byte address 0x4 - core index']
  #allocation1 [shape = 'u32[144,128]{1,0:T(1,128)}', space=vmem, size = 0x12000, scoped, tag = 'internal scratch']
  %s0 = inlined_call_operand.hbm [shape: f32[16,32], index: 0, kind: input, shape index: {}]
  %s1 = inlined_call_operand.hbm [shape: f32[176,128], index: 1, kind: input, shape index: {}]
  %s2 = inlined_call_operand.hbm [shape: f32[16,10], index: 2, kind: output, shape index: {}]
  %s3 = sld [smem:[#allocation0]]
  $region49: #{tpu_custom_call.1} parent=0
    _
  %s5 = ssub.s32 1, %s3
  %s6 = scalar_select 0, %s5, %s3
  $region1: #{tpu_custom_call.1} parent=0
    #allocation2 [shape = 'u8[8192]{0}', space=vmem, size = 0x2000, scoped, tag = 'input window, operand 0']
    #allocation3 [shape = 's32[2]{0}', space=sflag, size = 0x8, scoped, tag = 'scoped memory for tpu_custom_call.1']
    #allocation4 [shape = 's32[2]{0}', space=sflag, size = 0x8, scoped, tag = 'scoped memory for tpu_custom_call.1']
    #allocation5 [shape = 'u8[90112]{0}', space=vmem, size = 0x16000, scoped, tag = 'input window, operand 1, single buffered']
    #allocation6 [shape = 's32[1]{0}', space=sflag, size = 0x4, scoped, tag = 'scoped memory for tpu_custom_call.1']
    #allocation7 [shape = 'u8[8192]{0}', space=vmem, size = 0x2000, scoped, tag = 'output window, operand 0']
    %7 = vsyncpa [#allocation3], 0
    %s8 = scalar_lea.sflag [#allocation3], 1
    %9 = vsyncpa %s8, 0
    %10 = vsyncpa [#allocation6], 0
    %11 = vsyncpa [#allocation4], 0
    %s12 = scalar_lea.sflag [#allocation4], 1
    %13 = vsyncpa %s12, 0
    loop: start=0, step=1, limit=4
    $region2: #{tpu_custom_call.1} parent=1 // loop_pre_header
      _
    $region3: #{tpu_custom_call.1} parent=1 // loop_header
      %s15 = sphi 0, %s19
      %p16 = scmp.ge.s32.totalorder %s15, 4
      %s25 = sphi 0, %s27
      %s28 = sphi 0, %s25
      %s29 = sphi 0, %s28
      %s45 = sphi 0, %s29
      %s49 = sphi 0, %s49
      %s51 = sphi 0, %s49
      %s52 = sphi 0, %s51
      %s66 = sphi 0, %s52
      %s72 = sphi 0, %s74
      %s75 = sphi 0, %s72
      %s76 = sphi 0, %s75
      %s92 = sphi 0, %s76
    $region4: #{tpu_custom_call.1} parent=1 // loop_header_branch
      %18 = sbr.rel (%p16) target = $region8
    $region5: #{tpu_custom_call.1} parent=1 // loop_body
      %s20 = ssub.s32 %s15, 1
      %s21 = ssub.s32 %s15, 2
      %s22 = sadd.s32 %s15, 1
      %s23 = ssub.s32 %s15, %s22
      %p24 = scmp.eq.s32.totalorder %s23, 0
      %s26 = sadd.s32 %s25, 1
      %s27 = scalar_select %p24, %s25, %s26
      %p30 = pneg %p24
      %p31 = scmp.eq.s32.totalorder %s15, 1
      %p32 = por %p30, %p31
      %p33 = scmp.ne.s32.totalorder %s25, %s28
      %p34 = scmp.eq.s32.totalorder %s15, 0
      %p35 = por %p33, %p34
      %p36 = scmp.ne.s32.totalorder %s25, %s28
      %p37 = scmp.eq.s32.totalorder %s20, 1
      %p38 = por %p36, %p37
      %p39 = scmp.ne.s32.totalorder %s28, %s29
      %p40 = scmp.eq.s32.totalorder %s20, 0
      %p41 = por %p39, %p40
      %p42 = scmp.ne.s32.totalorder %s28, %s29
      %p43 = scmp.eq.s32.totalorder %s21, 1
      %p44 = por %p42, %p43
      %p46 = scmp.ne.s32.totalorder %s29, %s45
      %p47 = scmp.eq.s32.totalorder %s21, 0
      %p48 = por %p46, %p47
      %s50 = sadd.s32 %s49, 1
      %p53 = scmp.eq.s32.totalorder %s15, 1
      %p54 = scmp.ne.s32.totalorder %s49, %s51
      %p55 = scmp.eq.s32.totalorder %s15, 0
      %p56 = por %p54, %p55
      %p57 = scmp.ne.s32.totalorder %s49, %s51
      %p58 = scmp.eq.s32.totalorder %s20, 1
      %p59 = por %p57, %p58
      %p60 = scmp.ne.s32.totalorder %s51, %s52
      %p61 = scmp.eq.s32.totalorder %s20, 0
      %p62 = por %p60, %p61
      %p63 = scmp.ne.s32.totalorder %s51, %s52
      %p64 = scmp.eq.s32.totalorder %s21, 1
      %p65 = por %p63, %p64
      %p67 = scmp.ne.s32.totalorder %s52, %s66
      %p68 = scmp.eq.s32.totalorder %s21, 0
      %p69 = por %p67, %p68
      %s70 = ssub.s32 %s15, %s22
      %p71 = scmp.eq.s32.totalorder %s70, 0
      %s73 = sadd.s32 %s72, 1
      %s74 = scalar_select %p71, %s72, %s73
      %p77 = pneg %p71
      %p78 = scmp.eq.s32.totalorder %s15, 1
      %p79 = por %p77, %p78
      %p80 = scmp.ne.s32.totalorder %s72, %s75
      %p81 = scmp.eq.s32.totalorder %s15, 0
      %p82 = por %p80, %p81
      %p83 = scmp.ne.s32.totalorder %s72, %s75
      %p84 = scmp.eq.s32.totalorder %s20, 1
      %p85 = por %p83, %p84
      %p86 = scmp.ne.s32.totalorder %s75, %s76
      %p87 = scmp.eq.s32.totalorder %s20, 0
      %p88 = por %p86, %p87
      %p89 = scmp.ne.s32.totalorder %s75, %s76
      %p90 = scmp.eq.s32.totalorder %s21, 1
      %p91 = por %p89, %p90
      %p93 = scmp.ne.s32.totalorder %s76, %s92
      %p94 = scmp.eq.s32.totalorder %s21, 0
      %p95 = por %p93, %p94
      %p96 = scmp.le.s32.totalorder 1, %s15
      %p97 = scmp.lt.s32.totalorder %s15, 3
      %p98 = pnand %p96, %p97
      %p99 = pneg %p98
      // Predicated region
      $region9: #{tpu_custom_call.1} parent=5 // pred_check
        _
      $region10: #{tpu_custom_call.1} parent=5 // pred_check_branch
        %101 = sbr.rel (%p98) target = $region12
      $region11: #{tpu_custom_call.1} parent=5 // pred_region
        %s102 = ssub.s32 %s15, 1
        // Predicated region
        $region13: #{tpu_custom_call.1} parent=11 // pred_check
          %p103 = pneg %p62
        $region14: #{tpu_custom_call.1} parent=11 // pred_check_branch
          %105 = sbr.rel (%p103) target = $region16
        $region15: #{tpu_custom_call.1} parent=11 // pred_region
          %s107 = ssub.s32 2816, 2816
          %108 = vsyncadd [#allocation6], %s107
          %s109 = sshll.u32 [#allocation5], 4
          %s110 = int_to_ptr.vmem [resolvable:$true] %s109
          %115 = dma.hbm_to_vmem [thread:$0]  %s1, 2816, %s110, [#allocation6], 128, 128, 8
        $region16: #{tpu_custom_call.1} parent=11 // pred_fallthru
          _
      $region12: #{tpu_custom_call.1} parent=5 // pred_fallthru
        _
      %p116 = scmp.lt.s32.totalorder %s15, 2
      // Predicated region
      $region17: #{tpu_custom_call.1} parent=5 // pred_check
        %p117 = pneg %p116
      $region18: #{tpu_custom_call.1} parent=5 // pred_check_branch
        %119 = sbr.rel (%p117) target = $region20
      $region19: #{tpu_custom_call.1} parent=5 // pred_region
        // Predicated region
        $region21: #{tpu_custom_call.1} parent=19 // pred_check
          %p120 = pneg %p35
        $region22: #{tpu_custom_call.1} parent=19 // pred_check_branch
          %122 = sbr.rel (%p120) target = $region24
        $region23: #{tpu_custom_call.1} parent=19 // pred_region
          %s123 = sand.u32 %s25, 1
          %s124 = scalar_lea.sflag [#allocation3], %s123
          %s125 = sand.u32 %s25, 1
          %s126 = smul.addr %s125, 8
          %s127 = scalar_lea.vmem [#allocation2], %s126
          %s129 = ssub.s32 128, 128
          %130 = vsyncadd %s124, %s129
          %s131 = smul.addr %s15, 128
          %s132 = scalar_lea.hbm %s0, %s131
          %s134 = sshll.u32 %s127, 4
          %s135 = int_to_ptr.vmem [resolvable:$true] %s134
          %137 = dma.hbm_to_vmem [thread:$0]  %s132, 128, %s135, %s124
        $region24: #{tpu_custom_call.1} parent=19 // pred_fallthru
          _
      $region20: #{tpu_custom_call.1} parent=5 // pred_fallthru
        _
      %p138 = scmp.le.s32.totalorder 1, %s15
      %p139 = scmp.lt.s32.totalorder %s15, 3
      %p140 = pnand %p138, %p139
      %p141 = pneg %p140
      // Predicated region
      $region25: #{tpu_custom_call.1} parent=5 // pred_check
        _
      $region26: #{tpu_custom_call.1} parent=5 // pred_check_branch
        %143 = sbr.rel (%p140) target = $region28
      $region27: #{tpu_custom_call.1} parent=5 // pred_region
        %s144 = ssub.s32 %s15, 1
        %s145 = sand.u32 %s28, 1
        %s146 = scalar_lea.sflag [#allocation3], %s145
        %s147 = sand.u32 %s28, 1
        %s148 = smul.addr %s147, 8
        %s149 = scalar_lea.vmem [#allocation2], %s148
        // Predicated region
        $region29: #{tpu_custom_call.1} parent=27 // pred_check
          %p150 = pneg %p41
        $region30: #{tpu_custom_call.1} parent=27 // pred_check_branch
          %152 = sbr.rel (%p150) target = $region32
        $region31: #{tpu_custom_call.1} parent=27 // pred_region
          %153 = dma.done %s146, 128
        $region32: #{tpu_custom_call.1} parent=27 // pred_fallthru
          _
        // Predicated region
        $region33: #{tpu_custom_call.1} parent=27 // pred_check
          %p154 = pneg %p62
        $region34: #{tpu_custom_call.1} parent=27 // pred_check_branch
          %156 = sbr.rel (%p154) target = $region36
        $region35: #{tpu_custom_call.1} parent=27 // pred_region
          %157 = dma.done [#allocation6], 2816
        $region36: #{tpu_custom_call.1} parent=27 // pred_fallthru
          _
        %s158 = sand.u32 %s28, 1
        %s159 = scalar_lea.sflag [#allocation3], %s158
        %s160 = sand.u32 %s28, 1
        %s161 = smul.addr %s160, 8
        %s162 = scalar_lea.vmem [#allocation2], %s161
        %p163 = pneg %p41
        %p164 = pneg %p38
        %p165 = pneg %p62
        %p166 = pneg %p59
        %p167 = pneg %p88
        %p168 = pneg %p85
        %s169 = sand.u32 %s75, 1
        %s170 = scalar_lea.sflag [#allocation4], %s169
        %s171 = sand.u32 %s75, 1
        %s172 = smul.addr %s171, 8
        %s173 = scalar_lea.vmem [#allocation7], %s172
        %v174 = vld [vmem:[%s149] sm:$0xff]
        %v175 = vld [vmem:[#allocation5] sm:$0xff]
        %v176 = vld [vmem:[#allocation5 + $0x8] sm:$0xff]
        %v177 = vld [vmem:[#allocation5 + $0x10] sm:$0xff]
        %v178 = vld [vmem:[#allocation5 + $0x18] sm:$0xff]
        %v179 = vld [vmem:[#allocation5 + $0x20] sm:$0x1]
        %v180 = vld [vmem:[#allocation5 + $0x28] sm:$0xff]
        %v181 = vld [vmem:[#allocation5 + $0x30] sm:$0xff]
        %v182 = vld [vmem:[#allocation5 + $0x38] sm:$0xff]
        %v183 = vld [vmem:[#allocation5 + $0x40] sm:$0xff]
        %v184 = vld [vmem:[#allocation5 + $0x48] sm:$0xff]
        %v185 = vld [vmem:[#allocation5 + $0x50] sm:$0xff]
        %v186 = vld [vmem:[#allocation5 + $0x58] sm:$0xff]
        %v187 = vld [vmem:[#allocation5 + $0x60] sm:$0xff]
        %v188 = vld [vmem:[#allocation5 + $0x68] sm:$0xff]
        %v189 = vld [vmem:[#allocation5 + $0x70] sm:$0xff]
        %v190 = vld [vmem:[#allocation5 + $0x78] sm:$0xff]
        %v191 = vld [vmem:[#allocation5 + $0x80] sm:$0xff]
        %v192 = vld [vmem:[#allocation5 + $0x88] sm:$0xff]
        %v193 = vld [vmem:[#allocation5 + $0x90] sm:$0xff]
        %v194 = vld [vmem:[#allocation5 + $0x98] sm:$0xff]
        %v195 = vld [vmem:[#allocation5 + $0xa0] sm:$0xff]
        %v196 = vld [vmem:[#allocation5 + $0xa8] sm:$0x1]
        %v197 = vlaneseq
        %v198 = vshrl.u32 %v197, 7
        %v199 = vsub.s32 0, %v198
        %v200 = vrot.slane %v179, %v199
        %vm201 = vcmask 261120
        %v203 = vsel %vm201, %v174, 0
        %205 = vmatprep.subr.mxu0 0.0
        %206 = vmatpush1.msra.mxu0 0.0
        %207 = vmatprep.subr.mxu0 0.0
        %208 = vmatpush1.msra.mxu0 0.0
        %209 = vmatprep.subr.mxu0 0.0
        %210 = vmatpush1.msra.mxu0 0.0
        %211 = vmatprep.subr.mxu0 0.0
        %212 = vmatpush1.msra.mxu0 0.0
        %213 = vmatprep.subr.mxu0 0.0
        %214 = vmatpush1.msra.mxu0 0.0
        %215 = vmatprep.subr.mxu0 0.0
        %216 = vmatpush1.msra.mxu0 0.0
        %217 = vmatprep.subr.mxu0 0.0
        %218 = vmatpush1.msra.mxu0 0.0
        %219 = vmatprep.subr.mxu0 0.0
        %220 = vmatpush1.msra.mxu0 0.0
        %221 = vmatprep.subr.mxu0 0.0
        %222 = vmatpush1.msra.mxu0 0.0
        %223 = vmatprep.subr.mxu0 0.0
        %224 = vmatpush1.msra.mxu0 0.0
        %225 = vmatprep.subr.mxu0 0.0
        %226 = vmatpush1.msra.mxu0 0.0
        %227 = vmatprep.subr.mxu0 0.0
        %228 = vmatpush1.msra.mxu0 0.0
        %229 = vmatprep.subr.mxu0 0.0
        %230 = vmatpush1.msra.mxu0 %v178
        %231 = vmatprep.subr.mxu0 0.0
        %232 = vmatpush1.msra.mxu0 %v177
        %233 = vmatprep.subr.mxu0 0.0
        %234 = vmatpush1.msra.mxu0 %v176
        %235 = vmatprep.subr.mxu0 0.0
        %236 = vmatpush1.msra.mxu0 %v175
        %237 = vmatprep.subr.mxu0 0.0
        %238 = vmatpush2.msra.mxu0 0.0
        %239 = vmatprep.subr.mxu0 0.0
        %240 = vmatpush2.msra.mxu0 0.0
        %241 = vmatprep.subr.mxu0 0.0
        %242 = vmatpush2.msra.mxu0 0.0
        %243 = vmatprep.subr.mxu0 0.0
        %244 = vmatpush2.msra.mxu0 0.0
        %245 = vmatprep.subr.mxu0 0.0
        %246 = vmatpush2.msra.mxu0 0.0
        %247 = vmatprep.subr.mxu0 0.0
        %248 = vmatpush2.msra.mxu0 0.0
        %249 = vmatprep.subr.mxu0 0.0
        %250 = vmatpush2.msra.mxu0 0.0
        %251 = vmatprep.subr.mxu0 0.0
        %252 = vmatpush2.msra.mxu0 0.0
        %253 = vmatprep.subr.mxu0 0.0
        %254 = vmatpush2.msra.mxu0 0.0
        %255 = vmatprep.subr.mxu0 0.0
        %256 = vmatpush2.msra.mxu0 0.0
        %257 = vmatprep.subr.mxu0 0.0
        %258 = vmatpush2.msra.mxu0 0.0
        %259 = vmatprep.subr.mxu0 0.0
        %260 = vmatpush2.msra.mxu0 0.0
        %261 = vmatprep.subr.mxu0 0.0
        %262 = vmatpush2.msra.mxu0 0.0
        %263 = vmatprep.subr.mxu0 0.0
        %264 = vmatpush2.msra.mxu0 0.0
        %265 = vmatprep.subr.mxu0 0.0
        %266 = vmatpush2.msra.mxu0 0.0
        %267 = vmatprep.subr.mxu0 0.0
        %268 = vmatpush2.msra.mxu0 0.0
        %269 = vmatprep.mubr.f32.mxu0 0.0
        %270 = vmatmul.mubr.f32.gmra.mxu0 %v203
        %v271 = vpop.f32.mrf.mxu0
        %v272 = vadd.f32 %v200, %v271
        %v273 = vpop.f32.mrf.mxu0
        %274 = vdwg.mxu0
        %v275 = vmax.f32 %v272, 0.0
        %v276 = vlaneseq
        %v277 = vshrl.u32 %v276, 7
        %v278 = vsub.s32 0, %v277
        %v279 = vrot.slane %v196, %v278
        %280 = vmatprep.subr.mxu0 0.0
        %281 = vmatpush1.msra.mxu0 %v195
        %282 = vmatprep.subr.mxu0 0.0
        %283 = vmatpush1.msra.mxu0 %v194
        %284 = vmatprep.subr.mxu0 0.0
        %285 = vmatpush1.msra.mxu0 %v193
        %286 = vmatprep.subr.mxu0 0.0
        %287 = vmatpush1.msra.mxu0 %v192
        %288 = vmatprep.subr.mxu0 0.0
        %289 = vmatpush1.msra.mxu0 %v191
        %290 = vmatprep.subr.mxu0 0.0
        %291 = vmatpush1.msra.mxu0 %v190
        %292 = vmatprep.subr.mxu0 0.0
        %293 = vmatpush1.msra.mxu0 %v189
        %294 = vmatprep.subr.mxu0 0.0
        %295 = vmatpush1.msra.mxu0 %v188
        %296 = vmatprep.subr.mxu0 0.0
        %297 = vmatpush1.msra.mxu0 %v187
        %298 = vmatprep.subr.mxu0 0.0
        %299 = vmatpush1.msra.mxu0 %v186
        %300 = vmatprep.subr.mxu0 0.0
        %301 = vmatpush1.msra.mxu0 %v185
        %302 = vmatprep.subr.mxu0 0.0
        %303 = vmatpush1.msra.mxu0 %v184
        %304 = vmatprep.subr.mxu0 0.0
        %305 = vmatpush1.msra.mxu0 %v183
        %306 = vmatprep.subr.mxu0 0.0
        %307 = vmatpush1.msra.mxu0 %v182
        %308 = vmatprep.subr.mxu0 0.0
        %309 = vmatpush1.msra.mxu0 %v181
        %310 = vmatprep.subr.mxu0 0.0
        %311 = vmatpush1.msra.mxu0 %v180
        %312 = vmatprep.subr.mxu0 0.0
        %313 = vmatpush2.msra.mxu0 0.0
        %314 = vmatprep.subr.mxu0 0.0
        %315 = vmatpush2.msra.mxu0 0.0
        %316 = vmatprep.subr.mxu0 0.0
        %317 = vmatpush2.msra.mxu0 0.0
        %318 = vmatprep.subr.mxu0 0.0
        %319 = vmatpush2.msra.mxu0 0.0
        %320 = vmatprep.subr.mxu0 0.0
        %321 = vmatpush2.msra.mxu0 0.0
        %322 = vmatprep.subr.mxu0 0.0
        %323 = vmatpush2.msra.mxu0 0.0
        %324 = vmatprep.subr.mxu0 0.0
        %325 = vmatpush2.msra.mxu0 0.0
        %326 = vmatprep.subr.mxu0 0.0
        %327 = vmatpush2.msra.mxu0 0.0
        %328 = vmatprep.subr.mxu0 0.0
        %329 = vmatpush2.msra.mxu0 0.0
        %330 = vmatprep.subr.mxu0 0.0
        %331 = vmatpush2.msra.mxu0 0.0
        %332 = vmatprep.subr.mxu0 0.0
        %333 = vmatpush2.msra.mxu0 0.0
        %334 = vmatprep.subr.mxu0 0.0
        %335 = vmatpush2.msra.mxu0 0.0
        %336 = vmatprep.subr.mxu0 0.0
        %337 = vmatpush2.msra.mxu0 0.0
        %338 = vmatprep.subr.mxu0 0.0
        %339 = vmatpush2.msra.mxu0 0.0
        %340 = vmatprep.subr.mxu0 0.0
        %341 = vmatpush2.msra.mxu0 0.0
        %342 = vmatprep.subr.mxu0 0.0
        %343 = vmatpush2.msra.mxu0 0.0
        %344 = vmatprep.mubr.f32.mxu0 0.0
        %345 = vmatmul.mubr.f32.gmra.mxu0 %v275
        %v346 = vpop.f32.mrf.mxu0
        %v347 = vadd.f32 %v279, %v346
        %v348 = vpop.f32.mrf.mxu0
        %349 = vdwg.mxu0
        %350 = vmax.xlane.f32.xlu0 %v347
        %v351 = vpop.xlane.xlu0 %350
        %v352 = vsub.f32 %v347, %v351
        %v353 = vmul.f32 %v352, 1.442695
        %v354 = vpow.pop %v353
        %355 = vadd.xlane.f32.xlu0 %v354
        %v356 = vpop.xlane.xlu0 %355
        %v357 = vrcp.pop %v356
        %v358 = vmul.f32 %v356, %v357
        %v359 = vsub.f32 2.0, %v358
        %v360 = vmul.f32 %v357, %v359
        %v361 = vmul.f32 %v354, %v360
        %vm362 = vcmask 80896
        %363 = vst.msk [vmem:[%s173] sm:$0xff] %vm362, %v361
        %s364 = sand.u32 %s75, 1
        %s365 = scalar_lea.sflag [#allocation4], %s364
        %s366 = sand.u32 %s75, 1
        %s367 = smul.addr %s366, 8
        %s368 = scalar_lea.vmem [#allocation7], %s367
        // Predicated region
        $region37: #{tpu_custom_call.1} parent=27 // pred_check
          %p369 = pneg %p85
        $region38: #{tpu_custom_call.1} parent=27 // pred_check_branch
          %371 = sbr.rel (%p369) target = $region40
        $region39: #{tpu_custom_call.1} parent=27 // pred_region
          %s373 = ssub.s32 128, 128
          %374 = vsyncadd %s365, %s373
          %s375 = smul.addr %s20, 128
          %s376 = scalar_lea.hbm %s2, %s375
          %s378 = sshll.u32 %s368, 4
          %s379 = int_to_ptr.vmem [resolvable:$true] %s378
          %381 = dma.vmem_to_hbm [thread:$0]  %s379, 128, %s376, %s365
        $region40: #{tpu_custom_call.1} parent=27 // pred_fallthru
          _
      $region28: #{tpu_custom_call.1} parent=5 // pred_fallthru
        _
      %p382 = scmp.le.s32.totalorder 2, %s15
      // Predicated region
      $region41: #{tpu_custom_call.1} parent=5 // pred_check
        %p383 = pneg %p382
      $region42: #{tpu_custom_call.1} parent=5 // pred_check_branch
        %385 = sbr.rel (%p383) target = $region44
      $region43: #{tpu_custom_call.1} parent=5 // pred_region
        %s386 = ssub.s32 %s15, 2
        // Predicated region
        $region45: #{tpu_custom_call.1} parent=43 // pred_check
          %p387 = pneg %p91
        $region46: #{tpu_custom_call.1} parent=43 // pred_check_branch
          %389 = sbr.rel (%p387) target = $region48
        $region47: #{tpu_custom_call.1} parent=43 // pred_region
          %s390 = sand.u32 %s76, 1
          %s391 = scalar_lea.sflag [#allocation4], %s390
          %s392 = sand.u32 %s76, 1
          %s393 = smul.addr %s392, 8
          %s394 = scalar_lea.vmem [#allocation7], %s393
          %395 = dma.done %s391, 128
        $region48: #{tpu_custom_call.1} parent=43 // pred_fallthru
          _
      $region44: #{tpu_custom_call.1} parent=5 // pred_fallthru
        _
    $region6: #{tpu_custom_call.1} parent=1 // loop_footer
      %s19 = sadd.s32 1, %s15
    $region7: #{tpu_custom_call.1} parent=1 // loop_footer_branch
      %14 = sbr.rel target = $region3
    $region8: #{tpu_custom_call.1} parent=1 // loop_exit
      _
    %396 = vsyncpa [#allocation3], 1
    %s397 = scalar_lea.sflag [#allocation3], 1
    %398 = vsyncpa %s397, 1
    %399 = vsyncpa [#allocation6], 1
    %400 = vsyncpa [#allocation4], 1
    %s401 = scalar_lea.sflag [#allocation4], 1
    %402 = vsyncpa %s401, 1

</llo_original>
